<compile_context>
chip_gen: v5e
topology: v5e:2x2
jax: 0.10.0
libtpu: 0.0.40
codegen_flags: <defaults>
</compile_context>

<pallas_src>
import functools

import jax
import jax.numpy as jnp
from jax.experimental import pallas as pl
from jax.experimental.pallas import tpu as pltpu


_SMALL_B_THRESHOLD = 32                   # gridless SMEM-scalar path below this
_VMEM_OUT_BUDGET = 24 * 1024 * 1024       # double-buffered output tile budget
_VMEM_LIMIT_BYTES = 48 * 1024 * 1024      # explicit scoped-VMEM limit (safe on v7x)
_T_RESIDENT_BUDGET = 8 * 1024 * 1024      # max lane-padded footprint for resident t


# --------------------------------------------------------------------------- #
# Kernels
# --------------------------------------------------------------------------- #
def _small_kernel(t_ref, w_ref, b_ref, o_ref):
    """Gridless small-B path.

    t_ref: (B, 2) SMEM    w_ref: (2, H) VMEM    b_ref: (1, H) VMEM
    o_ref: (B, H) VMEM
    """
    w0 = w_ref[0:1, :]
    w1 = w_ref[1:2, :]
    b = b_ref[...]
    n_rows = o_ref.shape[0]                      # static, small
    for i in range(n_rows):                      # unrolled scalar*vector FMAs
        row = t_ref[i, 0] * w0 + t_ref[i, 1] * w1 + b
        o_ref[i:i + 1, :] = row.astype(o_ref.dtype)


def _tiled_kernel(t_ref, w_ref, b_ref, o_ref, *, block_b):
    """Batch-tiled large-B path.

    t_ref: (B_pad, 2) resident VMEM (sliced per step)  OR  (block_b, 2) blocked
    w_ref: (2, H) resident VMEM     b_ref: (1, H) resident VMEM
    o_ref: (block_b, H) pipelined output tile (lane-dense when H % 128 == 0)
    """
    if t_ref.shape[0] == block_b:
        t = t_ref[...]                           # blocked-input fallback
    else:
        start = pl.multiple_of(pl.program_id(0) * block_b, block_b)
        t = t_ref[pl.ds(start, block_b), :]      # slice of resident t
    w = w_ref[...]
    b = b_ref[...]
    # Pure-VPU linear with K=2: two broadcasted multiply-adds, no MXU.
    y = t[:, 0:1] * w[0:1, :] + t[:, 1:2] * w[1:2, :] + b
    o_ref[...] = y.astype(o_ref.dtype)


# --------------------------------------------------------------------------- #
# Parameter prep & block-size selection
# --------------------------------------------------------------------------- #
def prepare_params(weight, bias):
    """One-time conversion from PyTorch nn.Linear layout to kernel layout.

    weight: (hidden, 2) -> (2, hidden) (lane-dense);  bias: (hidden,) -> (1, hidden)
    """
    hidden, in_f = weight.shape
    assert in_f == 2
    return weight.T, bias.reshape(1, hidden)


def _pick_block_b(B, hidden, out_dtype):
    """Derive the batch tile from the VMEM budget (v7x-safe) and step overhead."""
    out_bytes = jnp.dtype(out_dtype).itemsize
    mult = max(8, 32 // out_bytes)               # sublane packing: 8 (f32) / 16 (bf16)
    # Dominant allocation is the double-buffered output tile.
    max_bb = _VMEM_OUT_BUDGET // (2 * hidden * out_bytes)
    # Target a multi-MiB tile (>= 512 rows) to amortize ~0.35us per grid step.
    target = max(512, (4 * 1024 * 1024) // (hidden * out_bytes))
    bb = max(mult, (min(max_bb, target) // mult) * mult)
    # v7x megacore: prefer >= 2 grid steps whenever B allows it.
    if B <= bb and B >= 2 * mult:
        half = pl.cdiv(B, 2)
        bb = max(mult, ((half + mult - 1) // mult) * mult)
    return bb


# --------------------------------------------------------------------------- #
# Wrapper
# --------------------------------------------------------------------------- #
def timestep_embedder(t, w_t, b2d, *, block_b=None, out_dtype=None):
    """y = t @ W.T + b  (nn.Linear(2, hidden) semantics).

    t:    (B, 2)       float32
    w_t:  (2, hidden)  pre-transposed weight (see prepare_params)
    b2d:  (1, hidden)  bias
    """
    B, in_f = t.shape
    assert in_f == 2
    hidden = w_t.shape[1]
    assert w_t.shape == (2, hidden) and b2d.shape == (1, hidden)
    out_dtype = jnp.dtype(out_dtype) if out_dtype is not None else t.dtype

    if block_b is None and B <= _SMALL_B_THRESHOLD:
        # Small-B path: gridless, t as SMEM scalars, params resident in VMEM.
        return pl.pallas_call(
            _small_kernel,
            out_shape=jax.ShapeDtypeStruct((B, hidden), out_dtype),
            in_specs=[
                pl.BlockSpec(memory_space=pltpu.MemorySpace.SMEM),
                pl.BlockSpec(memory_space=pltpu.MemorySpace.VMEM),
                pl.BlockSpec(memory_space=pltpu.MemorySpace.VMEM),
            ],
            out_specs=pl.BlockSpec(memory_space=pltpu.MemorySpace.VMEM),
        )(t, w_t, b2d)

    if block_b is None:
        block_b = _pick_block_b(B, hidden, out_dtype)

    grid_steps = pl.cdiv(B, block_b)
    b_pad = grid_steps * block_b
    if b_pad != B:
        # Pad only the tiny (B, 2) input so in-kernel slices never read OOB;
        # the partial last OUTPUT block is handled by Pallas masked stores.
        t = jnp.pad(t, ((0, b_pad - B), (0, 0)))

    # Keep t resident in VMEM (no per-step DMA) unless its lane-padded
    # footprint (~512 B/row for f32) would eat into the output-tile budget.
    resident_t_bytes = b_pad * 128 * t.dtype.itemsize
    if resident_t_bytes <= _T_RESIDENT_BUDGET:
        t_spec = pl.BlockSpec(memory_space=pltpu.MemorySpace.VMEM)
    else:
        t_spec = pl.BlockSpec((block_b, in_f), lambda i: (i, 0))

    kernel = functools.partial(_tiled_kernel, block_b=block_b)
    return pl.pallas_call(
        kernel,
        out_shape=jax.ShapeDtypeStruct((B, hidden), out_dtype),
        grid_spec=pl.GridSpec(
            grid=(grid_steps,),
            in_specs=[
                t_spec,
                # Grid-invariant params: full-array VMEM residency, no
                # double-buffering / pipeline bookkeeping.
                pl.BlockSpec(memory_space=pltpu.MemorySpace.VMEM),
                pl.BlockSpec(memory_space=pltpu.MemorySpace.VMEM),
            ],
            out_specs=pl.BlockSpec((block_b, hidden), lambda i: (i, 0)),
        ),
        compiler_params=pltpu.CompilerParams(
            dimension_semantics=("parallel",),
            vmem_limit_bytes=_VMEM_LIMIT_BYTES,
        ),
    )(t, w_t, b2d)


# --------------------------------------------------------------------------- #
# Demo / correctness check
# --------------------------------------------------------------------------- #
if __name__ == "__main__":
    key = jax.random.PRNGKey(0)
    k_t, k_w, k_b, k_t2, k_t3 = jax.random.split(key, 5)

    hidden = 128          # multiple of 128 -> lane-dense output stores
    in_features = 2

    # Deterministic synthetic parameters in the PyTorch (hidden, 2) layout,
    # converted ONCE to the kernel layout.
    bound = 1.0 / (in_features ** 0.5)
    weight = jax.random.uniform(k_w, (hidden, in_features), jnp.float32,
                                minval=-bound, maxval=bound)
    bias = jax.random.uniform(k_b, (hidden,), jnp.float32,
                              minval=-bound, maxval=bound)
    w_t, b2d = prepare_params(weight, bias)

    # --- small-B gridless path (SMEM scalar broadcast) ---
    B = 8
    t = jax.random.normal(k_t, (B, in_features), jnp.float32)
    out = jax.block_until_ready(timestep_embedder(t, w_t, b2d))
    ref = t @ weight.T + bias
    assert out.shape == (B, hidden)
    assert jnp.allclose(out, ref, atol=1e-5, rtol=1e-5), "mismatch (small)"

    # --- batch-tiled path, auto block_b (split into >=2 grid steps) ---
    B2 = 1024
    t2 = jax.random.normal(k_t2, (B2, in_features), jnp.float32)
    out2 = jax.block_until_ready(timestep_embedder(t2, w_t, b2d))
    ref2 = t2 @ weight.T + bias
    assert out2.shape == (B2, hidden)
    assert jnp.allclose(out2, ref2, atol=1e-5, rtol=1e-5), "mismatch (tiled)"

    # --- batch-tiled path, ragged B (partial last block) + bf16 output ---
    B3 = 1000
    t3 = jax.random.normal(k_t3, (B3, in_features), jnp.float32)
    out3 = jax.block_until_ready(
        timestep_embedder(t3, w_t, b2d, out_dtype=jnp.bfloat16))
    ref3 = t3 @ weight.T + bias
    assert out3.shape == (B3, hidden)
    assert jnp.allclose(out3.astype(jnp.float32), ref3, atol=2e-2, rtol=2e-2), \
        "mismatch (ragged bf16)"

    print("KERNEL_OK")
</pallas_src>

<mosaic_0001>
module attributes {stable_mosaic.version = 11 : i64} {
  func.func @_small_kernel(%arg0: memref<8x2xf32, #tpu.memory_space<smem>>, %arg1: memref<2x128xf32, #tpu.memory_space<vmem>>, %arg2: memref<1x128xf32, #tpu.memory_space<vmem>>, %arg3: memref<8x128xf32, #tpu.memory_space<vmem>>) attributes {dimension_semantics = [], scalar_prefetch = 0 : i64, scratch_operands = 0 : i64, tpu.core_type = #tpu.core_type<tc>} {
    %c0 = arith.constant 0 : index
    %c0_0 = arith.constant 0 : index
    %0 = vector.load %arg1[%c0, %c0_0] : memref<2x128xf32, #tpu.memory_space<vmem>>, vector<1x128xf32>
    %c1 = arith.constant 1 : index
    %c0_1 = arith.constant 0 : index
    %1 = vector.load %arg1[%c1, %c0_1] : memref<2x128xf32, #tpu.memory_space<vmem>>, vector<1x128xf32>
    %c0_2 = arith.constant 0 : index
    %c0_3 = arith.constant 0 : index
    %2 = vector.load %arg2[%c0_2, %c0_3] : memref<1x128xf32, #tpu.memory_space<vmem>>, vector<1x128xf32>
    %c0_4 = arith.constant 0 : index
    %c0_5 = arith.constant 0 : index
    %3 = memref.load %arg0[%c0_4, %c0_5] : memref<8x2xf32, #tpu.memory_space<smem>>
    %4 = vector.broadcast %3 : f32 to vector<1x128xf32>
    %5 = arith.mulf %4, %0 : vector<1x128xf32>
    %c0_6 = arith.constant 0 : index
    %c1_7 = arith.constant 1 : index
    %6 = memref.load %arg0[%c0_6, %c1_7] : memref<8x2xf32, #tpu.memory_space<smem>>
    %7 = vector.broadcast %6 : f32 to vector<1x128xf32>
    %8 = arith.mulf %7, %1 : vector<1x128xf32>
    %9 = arith.addf %5, %8 : vector<1x128xf32>
    %10 = arith.addf %9, %2 : vector<1x128xf32>
    %c0_8 = arith.constant 0 : index
    %c0_9 = arith.constant 0 : index
    %11 = vector.load %arg3[%c0_8, %c0_9] : memref<8x128xf32, #tpu.memory_space<vmem>>, vector<1x128xf32>
    tpu.vector_store %arg3[%c0_8, %c0_9], %10 {strides = array<i32>} : memref<8x128xf32, #tpu.memory_space<vmem>>, vector<1x128xf32>,
    %c1_10 = arith.constant 1 : index
    %c0_11 = arith.constant 0 : index
    %12 = memref.load %arg0[%c1_10, %c0_11] : memref<8x2xf32, #tpu.memory_space<smem>>
    %13 = vector.broadcast %12 : f32 to vector<1x128xf32>
    %14 = arith.mulf %13, %0 : vector<1x128xf32>
    %c1_12 = arith.constant 1 : index
    %c1_13 = arith.constant 1 : index
    %15 = memref.load %arg0[%c1_12, %c1_13] : memref<8x2xf32, #tpu.memory_space<smem>>
    %16 = vector.broadcast %15 : f32 to vector<1x128xf32>
    %17 = arith.mulf %16, %1 : vector<1x128xf32>
    %18 = arith.addf %14, %17 : vector<1x128xf32>
    %19 = arith.addf %18, %2 : vector<1x128xf32>
    %c1_14 = arith.constant 1 : index
    %c0_15 = arith.constant 0 : index
    %20 = vector.load %arg3[%c1_14, %c0_15] : memref<8x128xf32, #tpu.memory_space<vmem>>, vector<1x128xf32>
    tpu.vector_store %arg3[%c1_14, %c0_15], %19 {strides = array<i32>} : memref<8x128xf32, #tpu.memory_space<vmem>>, vector<1x128xf32>,
    %c2 = arith.constant 2 : index
    %c0_16 = arith.constant 0 : index
    %21 = memref.load %arg0[%c2, %c0_16] : memref<8x2xf32, #tpu.memory_space<smem>>
    %22 = vector.broadcast %21 : f32 to vector<1x128xf32>
    %23 = arith.mulf %22, %0 : vector<1x128xf32>
    %c2_17 = arith.constant 2 : index
    %c1_18 = arith.constant 1 : index
    %24 = memref.load %arg0[%c2_17, %c1_18] : memref<8x2xf32, #tpu.memory_space<smem>>
    %25 = vector.broadcast %24 : f32 to vector<1x128xf32>
    %26 = arith.mulf %25, %1 : vector<1x128xf32>
    %27 = arith.addf %23, %26 : vector<1x128xf32>
    %28 = arith.addf %27, %2 : vector<1x128xf32>
    %c2_19 = arith.constant 2 : index
    %c0_20 = arith.constant 0 : index
    %29 = vector.load %arg3[%c2_19, %c0_20] : memref<8x128xf32, #tpu.memory_space<vmem>>, vector<1x128xf32>
    tpu.vector_store %arg3[%c2_19, %c0_20], %28 {strides = array<i32>} : memref<8x128xf32, #tpu.memory_space<vmem>>, vector<1x128xf32>,
    %c3 = arith.constant 3 : index
    %c0_21 = arith.constant 0 : index
    %30 = memref.load %arg0[%c3, %c0_21] : memref<8x2xf32, #tpu.memory_space<smem>>
    %31 = vector.broadcast %30 : f32 to vector<1x128xf32>
    %32 = arith.mulf %31, %0 : vector<1x128xf32>
    %c3_22 = arith.constant 3 : index
    %c1_23 = arith.constant 1 : index
    %33 = memref.load %arg0[%c3_22, %c1_23] : memref<8x2xf32, #tpu.memory_space<smem>>
    %34 = vector.broadcast %33 : f32 to vector<1x128xf32>
    %35 = arith.mulf %34, %1 : vector<1x128xf32>
    %36 = arith.addf %32, %35 : vector<1x128xf32>
    %37 = arith.addf %36, %2 : vector<1x128xf32>
    %c3_24 = arith.constant 3 : index
    %c0_25 = arith.constant 0 : index
    %38 = vector.load %arg3[%c3_24, %c0_25] : memref<8x128xf32, #tpu.memory_space<vmem>>, vector<1x128xf32>
    tpu.vector_store %arg3[%c3_24, %c0_25], %37 {strides = array<i32>} : memref<8x128xf32, #tpu.memory_space<vmem>>, vector<1x128xf32>,
    %c4 = arith.constant 4 : index
    %c0_26 = arith.constant 0 : index
    %39 = memref.load %arg0[%c4, %c0_26] : memref<8x2xf32, #tpu.memory_space<smem>>
    %40 = vector.broadcast %39 : f32 to vector<1x128xf32>
    %41 = arith.mulf %40, %0 : vector<1x128xf32>
    %c4_27 = arith.constant 4 : index
    %c1_28 = arith.constant 1 : index
    %42 = memref.load %arg0[%c4_27, %c1_28] : memref<8x2xf32, #tpu.memory_space<smem>>
    %43 = vector.broadcast %42 : f32 to vector<1x128xf32>
    %44 = arith.mulf %43, %1 : vector<1x128xf32>
    %45 = arith.addf %41, %44 : vector<1x128xf32>
    %46 = arith.addf %45, %2 : vector<1x128xf32>
    %c4_29 = arith.constant 4 : index
    %c0_30 = arith.constant 0 : index
    %47 = vector.load %arg3[%c4_29, %c0_30] : memref<8x128xf32, #tpu.memory_space<vmem>>, vector<1x128xf32>
    tpu.vector_store %arg3[%c4_29, %c0_30], %46 {strides = array<i32>} : memref<8x128xf32, #tpu.memory_space<vmem>>, vector<1x128xf32>,
    %c5 = arith.constant 5 : index
    %c0_31 = arith.constant 0 : index
    %48 = memref.load %arg0[%c5, %c0_31] : memref<8x2xf32, #tpu.memory_space<smem>>
    %49 = vector.broadcast %48 : f32 to vector<1x128xf32>
    %50 = arith.mulf %49, %0 : vector<1x128xf32>
    %c5_32 = arith.constant 5 : index
    %c1_33 = arith.constant 1 : index
    %51 = memref.load %arg0[%c5_32, %c1_33] : memref<8x2xf32, #tpu.memory_space<smem>>
    %52 = vector.broadcast %51 : f32 to vector<1x128xf32>
    %53 = arith.mulf %52, %1 : vector<1x128xf32>
    %54 = arith.addf %50, %53 : vector<1x128xf32>
    %55 = arith.addf %54, %2 : vector<1x128xf32>
    %c5_34 = arith.constant 5 : index
    %c0_35 = arith.constant 0 : index
    %56 = vector.load %arg3[%c5_34, %c0_35] : memref<8x128xf32, #tpu.memory_space<vmem>>, vector<1x128xf32>
    tpu.vector_store %arg3[%c5_34, %c0_35], %55 {strides = array<i32>} : memref<8x128xf32, #tpu.memory_space<vmem>>, vector<1x128xf32>,
    %c6 = arith.constant 6 : index
    %c0_36 = arith.constant 0 : index
    %57 = memref.load %arg0[%c6, %c0_36] : memref<8x2xf32, #tpu.memory_space<smem>>
    %58 = vector.broadcast %57 : f32 to vector<1x128xf32>
    %59 = arith.mulf %58, %0 : vector<1x128xf32>
    %c6_37 = arith.constant 6 : index
    %c1_38 = arith.constant 1 : index
    %60 = memref.load %arg0[%c6_37, %c1_38] : memref<8x2xf32, #tpu.memory_space<smem>>
    %61 = vector.broadcast %60 : f32 to vector<1x128xf32>
    %62 = arith.mulf %61, %1 : vector<1x128xf32>
    %63 = arith.addf %59, %62 : vector<1x128xf32>
    %64 = arith.addf %63, %2 : vector<1x128xf32>
    %c6_39 = arith.constant 6 : index
    %c0_40 = arith.constant 0 : index
    %65 = vector.load %arg3[%c6_39, %c0_40] : memref<8x128xf32, #tpu.memory_space<vmem>>, vector<1x128xf32>
    tpu.vector_store %arg3[%c6_39, %c0_40], %64 {strides = array<i32>} : memref<8x128xf32, #tpu.memory_space<vmem>>, vector<1x128xf32>,
    %c7 = arith.constant 7 : index
    %c0_41 = arith.constant 0 : index
    %66 = memref.load %arg0[%c7, %c0_41] : memref<8x2xf32, #tpu.memory_space<smem>>
    %67 = vector.broadcast %66 : f32 to vector<1x128xf32>
    %68 = arith.mulf %67, %0 : vector<1x128xf32>
    %c7_42 = arith.constant 7 : index
    %c1_43 = arith.constant 1 : index
    %69 = memref.load %arg0[%c7_42, %c1_43] : memref<8x2xf32, #tpu.memory_space<smem>>
    %70 = vector.broadcast %69 : f32 to vector<1x128xf32>
    %71 = arith.mulf %70, %1 : vector<1x128xf32>
    %72 = arith.addf %68, %71 : vector<1x128xf32>
    %73 = arith.addf %72, %2 : vector<1x128xf32>
    %c7_44 = arith.constant 7 : index
    %c0_45 = arith.constant 0 : index
    %74 = vector.load %arg3[%c7_44, %c0_45] : memref<8x128xf32, #tpu.memory_space<vmem>>, vector<1x128xf32>
    tpu.vector_store %arg3[%c7_44, %c0_45], %73 {strides = array<i32>} : memref<8x128xf32, #tpu.memory_space<vmem>>, vector<1x128xf32>,
    return
  }
}

</mosaic_0001>

<llo_original>
// kernel: tpu_custom_call.1
$region0: #{tpu_custom_call.1}
  #allocation0 [shape = 'u32[]', space=smem, size = 0x4, offset = 0x4, fixed_abs, tag = 'smem constant byte address 0x4 - core index']
  #allocation1 [shape = 'u32[72,128]{1,0:T(1,128)}', space=vmem, size = 0x9000, scoped, tag = 'internal scratch']
  %s0 = inlined_call_operand.vmem [shape: f32[8,2], index: 0, kind: input, shape index: {}]
  %s1 = inlined_call_operand.vmem [shape: f32[2,128], index: 1, kind: input, shape index: {}]
  %s2 = inlined_call_operand.vmem [shape: f32[1,128], index: 2, kind: input, shape index: {}]
  %s3 = inlined_call_operand.hbm [shape: f32[8,128], index: 3, kind: output, shape index: {}]
  %s4 = sld [smem:[#allocation0]]
  $region26: #{tpu_custom_call.1} parent=0
    _
  %s6 = ssub.s32 1, %s4
  %s7 = scalar_select 0, %s6, %s4
  $region1: #{tpu_custom_call.1} parent=0
    #allocation2 [shape = 'u8[4096]{0}', space=smem, size = 0x1000, scoped, tag = 'input window, operand 0, single buffered']
    #allocation3 [shape = 's32[1]{0}', space=sflag, size = 0x4, scoped, tag = 'scoped memory for tpu_custom_call.1']
    #allocation4 [shape = 's32[1]{0}', space=sflag, size = 0x4, scoped, tag = 'scoped memory for tpu_custom_call.1']
    #allocation5 [shape = 'u8[4096]{0}', space=vmem, size = 0x1000, scoped, tag = 'output window, operand 0, single buffered']
    %8 = vsyncpa [#allocation4], 0
    %9 = vsyncpa [#allocation3], 0
    // Predicated region
    $region2: #{tpu_custom_call.1} parent=1 // pred_check
      _
    $region3: #{tpu_custom_call.1} parent=1 // pred_check_branch
      %11 = sbr.rel (0) target = $region5
    $region4: #{tpu_custom_call.1} parent=1 // pred_region
      %13 = vsyncadd [#allocation4], 0
      %s15 = sshll.u32 %s0, 4
      %s16 = int_to_ptr.vmem [resolvable:$true] %s15
      %18 = dma.vmem_to_smem %s16, 128, [#allocation2], [#allocation4]
    $region5: #{tpu_custom_call.1} parent=1 // pred_fallthru
      _
    // Predicated region
    $region6: #{tpu_custom_call.1} parent=1 // pred_check
      _
    $region7: #{tpu_custom_call.1} parent=1 // pred_check_branch
      %20 = sbr.rel (0) target = $region9
    $region8: #{tpu_custom_call.1} parent=1 // pred_region
      _
    $region9: #{tpu_custom_call.1} parent=1 // pred_fallthru
      _
    // Predicated region
    $region10: #{tpu_custom_call.1} parent=1 // pred_check
      _
    $region11: #{tpu_custom_call.1} parent=1 // pred_check_branch
      %22 = sbr.rel (0) target = $region13
    $region12: #{tpu_custom_call.1} parent=1 // pred_region
      _
    $region13: #{tpu_custom_call.1} parent=1 // pred_fallthru
      _
    // Predicated region
    $region14: #{tpu_custom_call.1} parent=1 // pred_check
      _
    $region15: #{tpu_custom_call.1} parent=1 // pred_check_branch
      %24 = sbr.rel (0) target = $region17
    $region16: #{tpu_custom_call.1} parent=1 // pred_region
      %26 = dma.done [#allocation4], 128
    $region17: #{tpu_custom_call.1} parent=1 // pred_fallthru
      _
    %27 = sfence
    %v28 = vld [vmem:[%s1] sm:$0x1]
    %v29 = vld [vmem:[%s1 + $0x1] sm:$0x1]
    %v30 = vld [vmem:[%s2] sm:$0x1]
    %s31 = sld [smem:[#allocation2]]
    %v32 = vstv %s31
    %v33 = vmul.f32 %v32, %v28
    %s34 = sld [smem:[#allocation2 + $0x1]]
    %v35 = vstv %s34
    %v36 = vmul.f32 %v35, %v29
    %v37 = vadd.f32 %v33, %v36
    %v38 = vadd.f32 %v37, %v30
    %39 = vst [vmem:[#allocation5] sm:$0x1] %v38
    %s40 = sld [smem:[#allocation2 + $0x80]]
    %v41 = vstv %s40
    %v42 = vmul.f32 %v41, %v28
    %s43 = sld [smem:[#allocation2 + $0x81]]
    %v44 = vstv %s43
    %v45 = vmul.f32 %v44, %v29
    %v46 = vadd.f32 %v42, %v45
    %v47 = vadd.f32 %v46, %v30
    %48 = vst [vmem:[#allocation5 + $0x1] sm:$0x1] %v47
    %s49 = sld [smem:[#allocation2 + $0x100]]
    %v50 = vstv %s49
    %v51 = vmul.f32 %v50, %v28
    %s52 = sld [smem:[#allocation2 + $0x101]]
    %v53 = vstv %s52
    %v54 = vmul.f32 %v53, %v29
    %v55 = vadd.f32 %v51, %v54
    %v56 = vadd.f32 %v55, %v30
    %57 = vst [vmem:[#allocation5 + $0x2] sm:$0x1] %v56
    %s58 = sld [smem:[#allocation2 + $0x180]]
    %v59 = vstv %s58
    %v60 = vmul.f32 %v59, %v28
    %s61 = sld [smem:[#allocation2 + $0x181]]
    %v62 = vstv %s61
    %v63 = vmul.f32 %v62, %v29
    %v64 = vadd.f32 %v60, %v63
    %v65 = vadd.f32 %v64, %v30
    %66 = vst [vmem:[#allocation5 + $0x3] sm:$0x1] %v65
    %s67 = sld [smem:[#allocation2 + $0x200]]
    %v68 = vstv %s67
    %v69 = vmul.f32 %v68, %v28
    %s70 = sld [smem:[#allocation2 + $0x201]]
    %v71 = vstv %s70
    %v72 = vmul.f32 %v71, %v29
    %v73 = vadd.f32 %v69, %v72
    %v74 = vadd.f32 %v73, %v30
    %75 = vst [vmem:[#allocation5 + $0x4] sm:$0x1] %v74
    %s76 = sld [smem:[#allocation2 + $0x280]]
    %v77 = vstv %s76
    %v78 = vmul.f32 %v77, %v28
    %s79 = sld [smem:[#allocation2 + $0x281]]
    %v80 = vstv %s79
    %v81 = vmul.f32 %v80, %v29
    %v82 = vadd.f32 %v78, %v81
    %v83 = vadd.f32 %v82, %v30
    %84 = vst [vmem:[#allocation5 + $0x5] sm:$0x1] %v83
    %s85 = sld [smem:[#allocation2 + $0x300]]
    %v86 = vstv %s85
    %v87 = vmul.f32 %v86, %v28
    %s88 = sld [smem:[#allocation2 + $0x301]]
    %v89 = vstv %s88
    %v90 = vmul.f32 %v89, %v29
    %v91 = vadd.f32 %v87, %v90
    %v92 = vadd.f32 %v91, %v30
    %93 = vst [vmem:[#allocation5 + $0x6] sm:$0x1] %v92
    %s94 = sld [smem:[#allocation2 + $0x380]]
    %v95 = vstv %s94
    %v96 = vmul.f32 %v95, %v28
    %s97 = sld [smem:[#allocation2 + $0x381]]
    %v98 = vstv %s97
    %v99 = vmul.f32 %v98, %v29
    %v100 = vadd.f32 %v96, %v99
    %v101 = vadd.f32 %v100, %v30
    %102 = vst [vmem:[#allocation5 + $0x7] sm:$0x1] %v101
    // Predicated region
    $region18: #{tpu_custom_call.1} parent=1 // pred_check
      _
    $region19: #{tpu_custom_call.1} parent=1 // pred_check_branch
      %104 = sbr.rel (0) target = $region21
    $region20: #{tpu_custom_call.1} parent=1 // pred_region
      %106 = vsyncadd [#allocation3], 0
      %s108 = sshll.u32 [#allocation5], 4
      %s109 = int_to_ptr.vmem [resolvable:$true] %s108
      %s110 = sshll.u32 %s3, 4
      %s111 = int_to_ptr.hbm [resolvable:$true] %s110
      %113 = dma.vmem_to_hbm [thread:$0]  %s109, 128, %s111, [#allocation3]
    $region21: #{tpu_custom_call.1} parent=1 // pred_fallthru
      _
    // Predicated region
    $region22: #{tpu_custom_call.1} parent=1 // pred_check
      _
    $region23: #{tpu_custom_call.1} parent=1 // pred_check_branch
      %115 = sbr.rel (0) target = $region25
    $region24: #{tpu_custom_call.1} parent=1 // pred_region
      %117 = dma.done [#allocation3], 128
    $region25: #{tpu_custom_call.1} parent=1 // pred_fallthru
      _
    %118 = vsyncpa [#allocation3], 1
    %119 = vsyncpa [#allocation4], 1

</llo_original>
